<compile_context>
chip_gen: v5e
topology: v5e:2x2
jax: 0.10.0
libtpu: 0.0.40
codegen_flags: <defaults>
</compile_context>

<pallas_src>
import numpy as np
import jax
import jax.numpy as jnp
from jax.experimental import pallas as pl
from jax.experimental.pallas import tpu as pltpu


_VMEM_LIMIT = 48 * 1024 * 1024   # fits v7x (64 MiB) with headroom; raise on v5e/v6e.


# ----------------------------------------------------------------------------
# Pass A: tiled avg-pool reduction + fused 1x1 conv / BN / ReLU  ->  y
# ----------------------------------------------------------------------------
def _run_pool_conv(x_flat, P2, W_all, b_all, mask, tile_hw):
    """x_flat (N, HW, Cin) bf16 -> y (N, PPpad, Cp) bf16."""
    N, HW, Cin = x_flat.shape
    PPpad = P2.shape[0]
    Cp = W_all.shape[1]
    T = HW // tile_hw

    def kernel(x_ref, p2_ref, w_ref, b_ref, m_ref, y_ref, acc_ref):
        t = pl.program_id(1)

        @pl.when(t == 0)
        def _():
            acc_ref[...] = jnp.zeros_like(acc_ref)

        # (PPpad, tile_hw) bf16 @ (tile_hw, Cin) bf16 -> f32 accumulate.
        acc_ref[...] += jnp.dot(p2_ref[...], x_ref[0],
                                preferred_element_type=jnp.float32)

        @pl.when(t == pl.num_programs(1) - 1)
        def _():
            z = jnp.dot(acc_ref[...].astype(jnp.bfloat16), w_ref[...],
                        preferred_element_type=jnp.float32)
            y = jnp.maximum(z + b_ref[...], 0.0) * m_ref[...]   # conv+BN+ReLU (f32)
            y_ref[0] = y.astype(y_ref.dtype)

    flops = 2 * N * (PPpad * HW * Cin + PPpad * Cin * Cp)
    bytes_accessed = (x_flat.size * 2 + N * int(P2.size) * 2 + int(W_all.size) * 2
                      + (int(b_all.size) + int(mask.size)) * 4 + N * PPpad * Cp * 2)

    # TODO(synk): single-buffer the grid-invariant constants (W, b, mask) with
    # pipeline_mode=pl.Buffered(1) once verified on the target jax version;
    # skipped here to keep lowering risk zero (their footprint is tiny vs. the
    # HW tiles).
    return pl.pallas_call(
        kernel,
        out_shape=jax.ShapeDtypeStruct((N, PPpad, Cp), jnp.bfloat16),
        grid=(N, T),
        in_specs=[
            pl.BlockSpec((1, tile_hw, Cin), lambda n, t: (n, t, 0)),
            pl.BlockSpec((PPpad, tile_hw), lambda n, t: (0, t)),
            pl.BlockSpec((Cin, Cp), lambda n, t: (0, 0)),
            pl.BlockSpec((1, Cp), lambda n, t: (0, 0)),
            pl.BlockSpec((PPpad, Cp), lambda n, t: (0, 0)),
        ],
        out_specs=pl.BlockSpec((1, PPpad, Cp), lambda n, t: (n, 0, 0)),
        scratch_shapes=[pltpu.VMEM((PPpad, Cin), jnp.float32)],
        compiler_params=pltpu.CompilerParams(
            dimension_semantics=("parallel", "arbitrary"),
            vmem_limit_bytes=_VMEM_LIMIT),
        cost_estimate=pl.CostEstimate(
            flops=int(flops), transcendentals=0, bytes_accessed=int(bytes_accessed)),
    )(x_flat, P2, W_all, b_all, mask)


# ----------------------------------------------------------------------------
# Pass B: tiled bilinear upsample + concatenated [x | paths] store
# ----------------------------------------------------------------------------
def _run_upsample_store(x_flat, y_all, U2, tile_hw):
    """-> (N, HW, Cin + Cp) bf16, channels already concatenated [x | paths]."""
    N, HW, Cin = x_flat.shape
    PPpad, Cp = y_all.shape[1], y_all.shape[2]
    Ctot = Cin + Cp
    T = HW // tile_hw

    def kernel(x_ref, y_ref, u2_ref, o_ref):
        # Two direct slice stores (no concatenate slab in VMEM/vregs).
        o_ref[0, :, :Cin] = x_ref[0].astype(o_ref.dtype)
        paths = jnp.dot(u2_ref[...], y_ref[0],
                        preferred_element_type=jnp.float32)   # (tile_hw, Cp)
        o_ref[0, :, Cin:] = paths.astype(o_ref.dtype)

    flops = 2 * N * HW * PPpad * Cp
    bytes_accessed = (x_flat.size * 2 + int(y_all.size) * 2
                      + N * int(U2.size) * 2 + N * HW * Ctot * 2)

    return pl.pallas_call(
        kernel,
        out_shape=jax.ShapeDtypeStruct((N, HW, Ctot), jnp.bfloat16),
        grid=(N, T),
        in_specs=[
            pl.BlockSpec((1, tile_hw, Cin), lambda n, t: (n, t, 0)),
            pl.BlockSpec((1, PPpad, Cp), lambda n, t: (n, 0, 0)),
            pl.BlockSpec((tile_hw, PPpad), lambda n, t: (t, 0)),
        ],
        out_specs=pl.BlockSpec((1, tile_hw, Ctot), lambda n, t: (n, t, 0)),
        compiler_params=pltpu.CompilerParams(
            dimension_semantics=("parallel", "parallel"),   # megacore over N *and* HW tiles
            vmem_limit_bytes=_VMEM_LIMIT),
        cost_estimate=pl.CostEstimate(
            flops=int(flops), transcendentals=0, bytes_accessed=int(bytes_accessed)),
    )(x_flat, y_all, U2)


# ----------------------------------------------------------------------------
# Glue: pooling / interpolation matrices, parameter init, wrapper
# ----------------------------------------------------------------------------
def _round_up(x, m):
    return (x + m - 1) // m * m


def _pool_matrix(p, size):
    """(p, size): row i averages the i-th block of length size//p."""
    assert size % p == 0, "avg_pool2d with kernel=stride=size//p requires divisibility"
    k = size // p
    m = np.zeros((p, size), dtype=np.float32)
    for i in range(p):
        m[i, i * k:(i + 1) * k] = 1.0 / k
    return m


def _interp_matrix(out_size, in_size):
    """(out_size, in_size): 1-D bilinear interpolation, align_corners=True."""
    m = np.zeros((out_size, in_size), dtype=np.float32)
    if in_size == 1:
        m[:, 0] = 1.0
        return m
    if out_size == 1:          # align_corners=True, single output sample -> src 0
        m[0, 0] = 1.0
        return m
    for y in range(out_size):
        src = y * (in_size - 1) / (out_size - 1)
        i0 = int(np.floor(src))
        i1 = min(i0 + 1, in_size - 1)
        w1 = src - i0
        m[y, i0] += 1.0 - w1
        m[y, i1] += w1
    return m


def _build_constants(pool_sizes, H, W, params):
    """Stacked pooling / upsample matrices (PPtot zero-padded to 128), fused
    conv weights, block-diagonal path mask."""
    P2s = [np.kron(_pool_matrix(p, H), _pool_matrix(p, W)) for p in pool_sizes]
    U2s = [np.kron(_interp_matrix(H, p), _interp_matrix(W, p)) for p in pool_sizes]
    P2_all = np.concatenate(P2s, axis=0)                  # (PPtot, HW)
    U2_all = np.concatenate(U2s, axis=1)                  # (HW, PPtot)
    PPtot = P2_all.shape[0]
    HW = H * W

    # Zero-pad PPtot (85 for pool_sizes 1,2,4,8) up to 128: sublane/lane
    # aligned tiles and a clean MXU contraction dim.  The mask zeroes the pad
    # rows, so this is mathematically free.
    PPpad = max(_round_up(PPtot, 128), 128)
    P2_pad = np.zeros((PPpad, HW), np.float32); P2_pad[:PPtot] = P2_all
    U2_pad = np.zeros((HW, PPpad), np.float32); U2_pad[:, :PPtot] = U2_all

    pps = [p * p for p in pool_sizes]
    couts = [int(w.shape[1]) for w, _ in params]
    mask = np.zeros((PPpad, sum(couts)), np.float32)       # block-diagonal path mask
    r = c = 0
    for pp, co in zip(pps, couts):
        mask[r:r + pp, c:c + co] = 1.0
        r += pp
        c += co

    W_all = jnp.concatenate([w for w, _ in params], axis=1)   # (Cin, Cp)
    b_all = jnp.concatenate([b for _, b in params], axis=1)   # (1, Cp)

    # NOTE: P2 weights (1/k^2) are exact powers of two here; U2 bilinear
    # weights lose a few bf16 ulps — keep them f32 if that ever matters.
    return (jnp.asarray(P2_pad, jnp.bfloat16),
            W_all.astype(jnp.bfloat16),
            b_all.astype(jnp.float32),
            jnp.asarray(mask, jnp.float32),
            jnp.asarray(U2_pad, jnp.bfloat16))


def init_params(key, in_channels, pool_sizes, eps=1e-5):
    """Deterministic synthetic params; BatchNorm (eval mode) folded into the
    1x1 conv.  Conv has bias=False because is_batchnorm=True in the module."""
    n_paths = len(pool_sizes)
    cout = in_channels // n_paths
    params = []
    for i in range(n_paths):
        kw, kg, kb = jax.random.split(jax.random.fold_in(key, i), 3)
        w = 0.1 * jax.random.normal(kw, (cout, in_channels), jnp.float32)  # (Cout, Cin)
        gamma = 1.0 + 0.1 * jax.random.normal(kg, (cout,), jnp.float32)
        beta = 0.1 * jax.random.normal(kb, (cout,), jnp.float32)
        running_mean = jnp.zeros((cout,), jnp.float32)
        running_var = jnp.ones((cout,), jnp.float32)
        # TODO(synk): training-mode BatchNorm (batch statistics) not modeled;
        # eval-mode running stats are folded into the conv instead.
        scale = gamma / jnp.sqrt(running_var + eps)
        w_fold = (w * scale[:, None]).T                    # (Cin, Cout)
        b_fold = (beta - running_mean * scale)[None, :]    # (1, Cout)
        params.append((w_fold, b_fold))
    return params


def _pick_tile_hw(HW, Cin, Ctot, PPpad):
    """Largest HW tile (divisor of HW, multiple of 8) whose double-buffered
    bf16 x/out/P2/U2 tiles fit a conservative VMEM budget."""
    budget = int(0.75 * _VMEM_LIMIT)
    cands = [t for t in range(1, HW + 1) if HW % t == 0 and (t % 8 == 0 or t == HW)]
    fitting = [t for t in cands if 4 * t * (Cin + Ctot + 2 * PPpad) <= budget]
    return max(fitting) if fitting else min(cands)


def pyramid_pooling(x_nchw, params, pool_sizes, tile_hw=None):
    """Matches pyramidPooling.forward (model_name='pspnet', fusion_mode='cat').
    Input is NCHW like PyTorch; output is NCHW bf16."""
    N, C, H, W = x_nchw.shape
    P2, Wf, bf, mask, U2 = _build_constants(pool_sizes, H, W, params)
    HW = H * W
    Cp = Wf.shape[1]

    if tile_hw is None:
        tile_hw = _pick_tile_hw(HW, C, C + Cp, P2.shape[0])
    assert HW % tile_hw == 0, "tile_hw must divide H*W"

    # bf16 in HBM for the dominant (HW-sized) traffic.
    x_flat = jnp.transpose(x_nchw, (0, 2, 3, 1)).reshape(N, HW, C).astype(jnp.bfloat16)

    y = _run_pool_conv(x_flat, P2, Wf, bf, mask, tile_hw)       # (N, PPpad, Cp) bf16
    out_flat = _run_upsample_store(x_flat, y, U2, tile_hw)      # (N, HW, C + Cp) bf16

    Ctot = out_flat.shape[-1]
    return jnp.transpose(out_flat.reshape(N, H, W, Ctot), (0, 3, 1, 2))


# Pure-JAX f32 reference using the unfused per-path math (checks the Pallas plumbing).
def _reference(x_nchw, params, pool_sizes):
    N, C, H, W = x_nchw.shape
    x_flat = jnp.transpose(x_nchw, (0, 2, 3, 1)).reshape(N, H * W, C)
    slices = [x_nchw]
    for p, (w_fold, b_fold) in zip(pool_sizes, params):
        P2 = jnp.asarray(np.kron(_pool_matrix(p, H), _pool_matrix(p, W)))
        U2 = jnp.asarray(np.kron(_interp_matrix(H, p), _interp_matrix(W, p)))
        pooled = jnp.einsum('ph,nhc->npc', P2, x_flat)
        y = jnp.maximum(jnp.einsum('npc,cd->npd', pooled, w_fold) + b_fold, 0.0)
        out = jnp.einsum('hp,npd->nhd', U2, y)
        cout = out.shape[-1]
        slices.append(jnp.transpose(out.reshape(N, H, W, cout), (0, 3, 1, 2)))
    return jnp.concatenate(slices, axis=1)


if __name__ == "__main__":
    key = jax.random.PRNGKey(0)
    kx, kp = jax.random.split(key)

    N, C, H, W = 2, 8, 16, 16
    pool_sizes = (1, 2, 4, 8)          # each path outputs C // 4 = 2 channels

    x = jax.random.normal(kx, (N, C, H, W), jnp.float32)
    params = init_params(kp, C, pool_sizes)

    # tile_hw=128 -> 2 HW tiles per batch element: exercises the tiled
    # accumulator-reduction path (H*W = 256).
    out = pyramid_pooling(x, params, pool_sizes, tile_hw=128)
    out = jax.block_until_ready(out)

    assert out.shape == (N, C + (C // len(pool_sizes)) * len(pool_sizes), H, W)
    assert out.dtype == jnp.bfloat16

    # Kernel consumes bf16(x); compare against an f32 reference fed the same
    # quantized input, with a bf16-operand-appropriate tolerance.
    x_q = x.astype(jnp.bfloat16).astype(jnp.float32)
    ref = jax.block_until_ready(_reference(x_q, params, pool_sizes))
    np.testing.assert_allclose(np.asarray(out.astype(jnp.float32)), np.asarray(ref),
                               rtol=2e-2, atol=2e-2)
    # x passthrough slab is bit-exact (bf16).
    np.testing.assert_array_equal(np.asarray(out[:, :C].astype(jnp.float32)),
                                  np.asarray(x_q))
    print("KERNEL_OK")
</pallas_src>

<mosaic_0001>
module attributes {stable_mosaic.version = 11 : i64} {
  func.func @kernel(%arg0: i32, %arg1: i32, %arg2: memref<1x128x8xbf16, #tpu.memory_space<vmem>>, %arg3: memref<128x128xbf16, #tpu.memory_space<vmem>>, %arg4: memref<8x8xbf16, #tpu.memory_space<vmem>>, %arg5: memref<1x8xf32, #tpu.memory_space<vmem>>, %arg6: memref<128x8xf32, #tpu.memory_space<vmem>>, %arg7: memref<1x128x8xbf16, #tpu.memory_space<vmem>>, %arg8: memref<128x8xf32, #tpu.memory_space<vmem>>) attributes {dimension_semantics = [#tpu.dimension_semantics<parallel>, #tpu.dimension_semantics<arbitrary>], iteration_bounds = array<i64: 2, 2>, scalar_prefetch = 0 : i64, scratch_operands = 1 : i64, tpu.core_type = #tpu.core_type<tc>, window_params = [{transform_indices = @transform_0, window_bounds = array<i64: 1, 128, 8>}, {transform_indices = @transform_1, window_bounds = array<i64: 128, 128>}, {pipeline_mode = #tpu.pipeline_mode<synchronous>, transform_indices = @transform_2, window_bounds = array<i64: 8, 8>}, {pipeline_mode = #tpu.pipeline_mode<synchronous>, transform_indices = @transform_3, window_bounds = array<i64: 1, 8>}, {pipeline_mode = #tpu.pipeline_mode<synchronous>, transform_indices = @transform_4, window_bounds = array<i64: 128, 8>}, {transform_indices = @transform_5, window_bounds = array<i64: 1, 128, 8>}]} {
    %c0_i32 = arith.constant 0 : i32
    %0 = arith.cmpi eq, %arg1, %c0_i32 : i32
    %1 = arith.extui %0 : i1 to i32
    %c0_i32_0 = arith.constant 0 : i32
    %2 = arith.cmpi ne, %1, %c0_i32_0 : i32
    scf.if %2 {
      %cst_10 = arith.constant 0.000000e+00 : f32
      %13 = vector.broadcast %cst_10 : f32 to vector<128x8xf32>
      %c0_11 = arith.constant 0 : index
      %c0_12 = arith.constant 0 : index
      %14 = vector.load %arg8[%c0_11, %c0_12] : memref<128x8xf32, #tpu.memory_space<vmem>>, vector<128x8xf32>
      tpu.vector_store %arg8[%c0_11, %c0_12], %13 {strides = array<i32>} : memref<128x8xf32, #tpu.memory_space<vmem>>, vector<128x8xf32>,
    } else {
    }
    %c0 = arith.constant 0 : index
    %c0_1 = arith.constant 0 : index
    %3 = vector.load %arg8[%c0, %c0_1] : memref<128x8xf32, #tpu.memory_space<vmem>>, vector<128x8xf32>
    %c0_2 = arith.constant 0 : index
    %c0_3 = arith.constant 0 : index
    %4 = vector.load %arg3[%c0_2, %c0_3] : memref<128x128xbf16, #tpu.memory_space<vmem>>, vector<128x128xbf16>
    %c0_4 = arith.constant 0 : index
    %c0_5 = arith.constant 0 : index
    %c0_6 = arith.constant 0 : index
    %5 = vector.load %arg2[%c0_4, %c0_5, %c0_6] : memref<1x128x8xbf16, #tpu.memory_space<vmem>>, vector<1x128x8xbf16>
    %6 = vector.shape_cast %5 : vector<1x128x8xbf16> to vector<128x8xbf16>
    %cst = arith.constant dense<0.000000e+00> : vector<128x8xf32>
    %7 = tpu.matmul %4, %6, %cst {dimension_numbers = #tpu.dot_dimension_numbers<[1], [0], [0], [1], [0, 0, 1, 1], [], []>} : vector<128x128xbf16>, vector<128x8xbf16>, vector<128x8xf32> -> vector<128x8xf32>
    %8 = arith.addf %3, %7 : vector<128x8xf32>
    %c0_7 = arith.constant 0 : index
    %c0_8 = arith.constant 0 : index
    %9 = vector.load %arg8[%c0_7, %c0_8] : memref<128x8xf32, #tpu.memory_space<vmem>>, vector<128x8xf32>
    tpu.vector_store %arg8[%c0_7, %c0_8], %8 {strides = array<i32>} : memref<128x8xf32, #tpu.memory_space<vmem>>, vector<128x8xf32>,
    %c1_i32 = arith.constant 1 : i32
    %10 = arith.cmpi eq, %arg1, %c1_i32 : i32
    %11 = arith.extui %10 : i1 to i32
    %c0_i32_9 = arith.constant 0 : i32
    %12 = arith.cmpi ne, %11, %c0_i32_9 : i32
    scf.if %12 {
      %c0_10 = arith.constant 0 : index
      %c0_11 = arith.constant 0 : index
      %13 = vector.load %arg8[%c0_10, %c0_11] : memref<128x8xf32, #tpu.memory_space<vmem>>, vector<128x8xf32>
      %14 = arith.truncf %13 : vector<128x8xf32> to vector<128x8xbf16>
      %c0_12 = arith.constant 0 : index
      %c0_13 = arith.constant 0 : index
      %15 = vector.load %arg4[%c0_12, %c0_13] : memref<8x8xbf16, #tpu.memory_space<vmem>>, vector<8x8xbf16>
      %cst_14 = arith.constant dense<0.000000e+00> : vector<128x8xf32>
      %16 = tpu.matmul %14, %15, %cst_14 {dimension_numbers = #tpu.dot_dimension_numbers<[1], [0], [0], [1], [0, 0, 1, 1], [], []>} : vector<128x8xbf16>, vector<8x8xbf16>, vector<128x8xf32> -> vector<128x8xf32>
      %c0_15 = arith.constant 0 : index
      %c0_16 = arith.constant 0 : index
      %17 = vector.load %arg5[%c0_15, %c0_16] : memref<1x8xf32, #tpu.memory_space<vmem>>, vector<1x8xf32>
      %18 = vector.broadcast %17 : vector<1x8xf32> to vector<128x8xf32>
      %19 = arith.addf %16, %18 : vector<128x8xf32>
      %cst_17 = arith.constant 0.000000e+00 : f32
      %20 = vector.broadcast %cst_17 : f32 to vector<128x8xf32>
      %21 = arith.maximumf %19, %20 : vector<128x8xf32>
      %c0_18 = arith.constant 0 : index
      %c0_19 = arith.constant 0 : index
      %22 = vector.load %arg6[%c0_18, %c0_19] : memref<128x8xf32, #tpu.memory_space<vmem>>, vector<128x8xf32>
      %23 = arith.mulf %21, %22 : vector<128x8xf32>
      %24 = arith.truncf %23 : vector<128x8xf32> to vector<128x8xbf16>
      %c0_20 = arith.constant 0 : index
      %c0_21 = arith.constant 0 : index
      %c0_22 = arith.constant 0 : index
      %25 = vector.load %arg7[%c0_20, %c0_21, %c0_22] : memref<1x128x8xbf16, #tpu.memory_space<vmem>>, vector<1x128x8xbf16>
      %26 = vector.shape_cast %25 : vector<1x128x8xbf16> to vector<128x8xbf16>
      %27 = vector.shape_cast %24 : vector<128x8xbf16> to vector<1x128x8xbf16>
      tpu.vector_store %arg7[%c0_20, %c0_21, %c0_22], %27 {strides = array<i32>} : memref<1x128x8xbf16, #tpu.memory_space<vmem>>, vector<1x128x8xbf16>,
    } else {
    }
    return
  }
  func.func @transform_0(%arg0: i32, %arg1: i32) -> (i32, i32, i32) {
    %c0_i32 = arith.constant 0 : i32
    %c0_i32_0 = arith.constant 0 : i32
    return %arg0, %arg1, %c0_i32 : i32, i32, i32
  }
  func.func @transform_1(%arg0: i32, %arg1: i32) -> (i32, i32) {
    %c0_i32 = arith.constant 0 : i32
    %c0_i32_0 = arith.constant 0 : i32
    return %c0_i32, %arg1 : i32, i32
  }
  func.func @transform_2(%arg0: i32, %arg1: i32) -> (i32, i32) {
    %c0_i32 = arith.constant 0 : i32
    %c0_i32_0 = arith.constant 0 : i32
    %c0_i32_1 = arith.constant 0 : i32
    return %c0_i32, %c0_i32_0 : i32, i32
  }
  func.func @transform_3(%arg0: i32, %arg1: i32) -> (i32, i32) {
    %c0_i32 = arith.constant 0 : i32
    %c0_i32_0 = arith.constant 0 : i32
    %c0_i32_1 = arith.constant 0 : i32
    return %c0_i32, %c0_i32_0 : i32, i32
  }
  func.func @transform_4(%arg0: i32, %arg1: i32) -> (i32, i32) {
    %c0_i32 = arith.constant 0 : i32
    %c0_i32_0 = arith.constant 0 : i32
    %c0_i32_1 = arith.constant 0 : i32
    return %c0_i32, %c0_i32_0 : i32, i32
  }
  func.func @transform_5(%arg0: i32, %arg1: i32) -> (i32, i32, i32) {
    %c0_i32 = arith.constant 0 : i32
    %c0_i32_0 = arith.constant 0 : i32
    %c0_i32_1 = arith.constant 0 : i32
    return %arg0, %c0_i32, %c0_i32_0 : i32, i32, i32
  }
}

</mosaic_0001>

<llo_original>
// kernel: tpu_custom_call.1
$region0: #{tpu_custom_call.1}
  #allocation0 [shape = 'u32[]', space=smem, size = 0x4, offset = 0x4, fixed_abs, tag = 'smem constant byte address 0x4 - core index']
  #allocation1 [shape = 'u32[72,128]{1,0:T(1,128)}', space=vmem, size = 0x9000, scoped, tag = 'internal scratch']
  #allocation2 [shape = 'f32[128,8]{1,0:T(8,128)}', space=vmem, size = 0x10000, scoped, tag = 'scratch operand']
  %s0 = inlined_call_operand.vmem [shape: bf16[2,256,8], index: 0, kind: input, shape index: {}]
  %s1 = inlined_call_operand.vmem [shape: bf16[128,256], index: 1, kind: input, shape index: {}]
  %s2 = inlined_call_operand.vmem [shape: bf16[8,8], index: 2, kind: input, shape index: {}]
  %s3 = inlined_call_operand.vmem [shape: f32[1,8], index: 3, kind: input, shape index: {}]
  %s4 = inlined_call_operand.vmem [shape: f32[128,8], index: 4, kind: input, shape index: {}]
  %s5 = inlined_call_operand.vmem [shape: bf16[2,128,8], index: 5, kind: output, shape index: {}]
  %s6 = sld [smem:[#allocation0]]
  $region102: #{tpu_custom_call.1} parent=0
    _
  %s8 = ssub.s32 1, %s6
  %s9 = scalar_select 0, %s8, %s6
  $region1: #{tpu_custom_call.1} parent=0
    #allocation3 [shape = 'u8[65536]{0}', space=vmem, size = 0x10000, scoped, tag = 'input window, operand 1']
    loop: start=0, step=1, limit=6
    $region2: #{tpu_custom_call.1} parent=1 // loop_pre_header
      _
    $region3: #{tpu_custom_call.1} parent=1 // loop_header
      %s11 = sphi 0, %s15
      %p12 = scmp.ge.s32.totalorder %s11, 6
      %s18 = sphi 0, %s30
      %s19 = sphi 0, %s26
      %s20 = sphi 0, %s18
      %s21 = sphi 0, %s19
      %s22 = sphi 0, %s20
      %s23 = sphi 0, %s21
      %s35 = sphi 0, %s37
      %s38 = sphi 0, %s35
      %s39 = sphi 0, %s38
      %s55 = sphi 0, %s39
      %s61 = sphi 0, %s63
      %s64 = sphi 0, %s61
      %s65 = sphi 0, %s64
      %s81 = sphi 0, %s65
      %s85 = sphi 0, %s85
      %s87 = sphi 0, %s85
      %s88 = sphi 0, %s87
      %s102 = sphi 0, %s88
      %s106 = sphi 0, %s106
      %s108 = sphi 0, %s106
      %s109 = sphi 0, %s108
      %s123 = sphi 0, %s109
      %s127 = sphi 0, %s127
      %s129 = sphi 0, %s127
      %s130 = sphi 0, %s129
      %s144 = sphi 0, %s130
      %s150 = sphi 0, %s152
      %s153 = sphi 0, %s150
      %s154 = sphi 0, %s153
      %s170 = sphi 0, %s154
    $region4: #{tpu_custom_call.1} parent=1 // loop_header_branch
      %14 = sbr.rel (%p12) target = $region8
    $region5: #{tpu_custom_call.1} parent=1 // loop_body
      %s16 = ssub.s32 %s11, 1
      %s17 = ssub.s32 %s11, 2
      %s24 = sadd.s32 1, %s19
      %p25 = scmp.ge.s32.totalorder %s24, 2
      %s26 = scalar_select %p25, 0, %s24
      %s27 = sadd.s32 1, %s18
      %s28 = scalar_select %p25, %s27, %s18
      %p29 = scmp.ge.s32.totalorder %s28, 2
      %s30 = scalar_select %p29, 0, %s28
      %s31 = ssub.s32 %s18, %s30
      %s32 = ssub.s32 %s19, %s26
      %s33 = sor.u32 %s31, %s32
      %p34 = scmp.eq.s32.totalorder %s33, 0
      %s36 = sadd.s32 %s35, 1
      %s37 = scalar_select %p34, %s35, %s36
      %p40 = pneg %p34
      %p41 = scmp.eq.s32.totalorder %s11, 3
      %p42 = por %p40, %p41
      %p43 = scmp.ne.s32.totalorder %s35, %s38
      %p44 = scmp.eq.s32.totalorder %s11, 0
      %p45 = por %p43, %p44
      %p46 = scmp.ne.s32.totalorder %s35, %s38
      %p47 = scmp.eq.s32.totalorder %s16, 3
      %p48 = por %p46, %p47
      %p49 = scmp.ne.s32.totalorder %s38, %s39
      %p50 = scmp.eq.s32.totalorder %s16, 0
      %p51 = por %p49, %p50
      %p52 = scmp.ne.s32.totalorder %s38, %s39
      %p53 = scmp.eq.s32.totalorder %s17, 3
      %p54 = por %p52, %p53
      %p56 = scmp.ne.s32.totalorder %s39, %s55
      %p57 = scmp.eq.s32.totalorder %s17, 0
      %p58 = por %p56, %p57
      %s59 = ssub.s32 %s19, %s26
      %p60 = scmp.eq.s32.totalorder %s59, 0
      %s62 = sadd.s32 %s61, 1
      %s63 = scalar_select %p60, %s61, %s62
      %p66 = pneg %p60
      %p67 = scmp.eq.s32.totalorder %s11, 3
      %p68 = por %p66, %p67
      %p69 = scmp.ne.s32.totalorder %s61, %s64
      %p70 = scmp.eq.s32.totalorder %s11, 0
      %p71 = por %p69, %p70
      %p72 = scmp.ne.s32.totalorder %s61, %s64
      %p73 = scmp.eq.s32.totalorder %s16, 3
      %p74 = por %p72, %p73
      %p75 = scmp.ne.s32.totalorder %s64, %s65
      %p76 = scmp.eq.s32.totalorder %s16, 0
      %p77 = por %p75, %p76
      %p78 = scmp.ne.s32.totalorder %s64, %s65
      %p79 = scmp.eq.s32.totalorder %s17, 3
      %p80 = por %p78, %p79
      %p82 = scmp.ne.s32.totalorder %s65, %s81
      %p83 = scmp.eq.s32.totalorder %s17, 0
      %p84 = por %p82, %p83
      %s86 = sadd.s32 %s85, 1
      %p89 = scmp.eq.s32.totalorder %s11, 3
      %p90 = scmp.ne.s32.totalorder %s85, %s87
      %p91 = scmp.eq.s32.totalorder %s11, 0
      %p92 = por %p90, %p91
      %p93 = scmp.ne.s32.totalorder %s85, %s87
      %p94 = scmp.eq.s32.totalorder %s16, 3
      %p95 = por %p93, %p94
      %p96 = scmp.ne.s32.totalorder %s87, %s88
      %p97 = scmp.eq.s32.totalorder %s16, 0
      %p98 = por %p96, %p97
      %p99 = scmp.ne.s32.totalorder %s87, %s88
      %p100 = scmp.eq.s32.totalorder %s17, 3
      %p101 = por %p99, %p100
      %p103 = scmp.ne.s32.totalorder %s88, %s102
      %p104 = scmp.eq.s32.totalorder %s17, 0
      %p105 = por %p103, %p104
      %s107 = sadd.s32 %s106, 1
      %p110 = scmp.eq.s32.totalorder %s11, 3
      %p111 = scmp.ne.s32.totalorder %s106, %s108
      %p112 = scmp.eq.s32.totalorder %s11, 0
      %p113 = por %p111, %p112
      %p114 = scmp.ne.s32.totalorder %s106, %s108
      %p115 = scmp.eq.s32.totalorder %s16, 3
      %p116 = por %p114, %p115
      %p117 = scmp.ne.s32.totalorder %s108, %s109
      %p118 = scmp.eq.s32.totalorder %s16, 0
      %p119 = por %p117, %p118
      %p120 = scmp.ne.s32.totalorder %s108, %s109
      %p121 = scmp.eq.s32.totalorder %s17, 3
      %p122 = por %p120, %p121
      %p124 = scmp.ne.s32.totalorder %s109, %s123
      %p125 = scmp.eq.s32.totalorder %s17, 0
      %p126 = por %p124, %p125
      %s128 = sadd.s32 %s127, 1
      %p131 = scmp.eq.s32.totalorder %s11, 3
      %p132 = scmp.ne.s32.totalorder %s127, %s129
      %p133 = scmp.eq.s32.totalorder %s11, 0
      %p134 = por %p132, %p133
      %p135 = scmp.ne.s32.totalorder %s127, %s129
      %p136 = scmp.eq.s32.totalorder %s16, 3
      %p137 = por %p135, %p136
      %p138 = scmp.ne.s32.totalorder %s129, %s130
      %p139 = scmp.eq.s32.totalorder %s16, 0
      %p140 = por %p138, %p139
      %p141 = scmp.ne.s32.totalorder %s129, %s130
      %p142 = scmp.eq.s32.totalorder %s17, 3
      %p143 = por %p141, %p142
      %p145 = scmp.ne.s32.totalorder %s130, %s144
      %p146 = scmp.eq.s32.totalorder %s17, 0
      %p147 = por %p145, %p146
      %s148 = ssub.s32 %s18, %s30
      %p149 = scmp.eq.s32.totalorder %s148, 0
      %s151 = sadd.s32 %s150, 1
      %s152 = scalar_select %p149, %s150, %s151
      %p155 = pneg %p149
      %p156 = scmp.eq.s32.totalorder %s11, 3
      %p157 = por %p155, %p156
      %p158 = scmp.ne.s32.totalorder %s150, %s153
      %p159 = scmp.eq.s32.totalorder %s11, 0
      %p160 = por %p158, %p159
      %p161 = scmp.ne.s32.totalorder %s150, %s153
      %p162 = scmp.eq.s32.totalorder %s16, 3
      %p163 = por %p161, %p162
      %p164 = scmp.ne.s32.totalorder %s153, %s154
      %p165 = scmp.eq.s32.totalorder %s16, 0
      %p166 = por %p164, %p165
      %p167 = scmp.ne.s32.totalorder %s153, %s154
      %p168 = scmp.eq.s32.totalorder %s17, 3
      %p169 = por %p167, %p168
      %p171 = scmp.ne.s32.totalorder %s154, %s170
      %p172 = scmp.eq.s32.totalorder %s17, 0
      %p173 = por %p171, %p172
      %p174 = scmp.le.s32.totalorder 1, %s11
      %p175 = scmp.lt.s32.totalorder %s11, 5
      %p176 = pnand %p174, %p175
      %p177 = pneg %p176
      // Predicated region
      $region9: #{tpu_custom_call.1} parent=5 // pred_check
        _
      $region10: #{tpu_custom_call.1} parent=5 // pred_check_branch
        %179 = sbr.rel (%p176) target = $region12
      $region11: #{tpu_custom_call.1} parent=5 // pred_region
        %s180 = ssub.s32 %s11, 1
        // Predicated region
        $region13: #{tpu_custom_call.1} parent=11 // pred_check
          %p181 = pneg %p98
        $region14: #{tpu_custom_call.1} parent=11 // pred_check_branch
          %183 = sbr.rel (%p181) target = $region16
        $region15: #{tpu_custom_call.1} parent=11 // pred_region
          _
        $region16: #{tpu_custom_call.1} parent=11 // pred_fallthru
          _
        // Predicated region
        $region17: #{tpu_custom_call.1} parent=11 // pred_check
          %p184 = pneg %p119
        $region18: #{tpu_custom_call.1} parent=11 // pred_check_branch
          %186 = sbr.rel (%p184) target = $region20
        $region19: #{tpu_custom_call.1} parent=11 // pred_region
          _
        $region20: #{tpu_custom_call.1} parent=11 // pred_fallthru
          _
        // Predicated region
        $region21: #{tpu_custom_call.1} parent=11 // pred_check
          %p187 = pneg %p140
        $region22: #{tpu_custom_call.1} parent=11 // pred_check_branch
          %189 = sbr.rel (%p187) target = $region24
        $region23: #{tpu_custom_call.1} parent=11 // pred_region
          _
        $region24: #{tpu_custom_call.1} parent=11 // pred_fallthru
          _
      $region12: #{tpu_custom_call.1} parent=5 // pred_fallthru
        _
      %p190 = scmp.lt.s32.totalorder %s11, 4
      // Predicated region
      $region25: #{tpu_custom_call.1} parent=5 // pred_check
        %p191 = pneg %p190
      $region26: #{tpu_custom_call.1} parent=5 // pred_check_branch
        %193 = sbr.rel (%p191) target = $region28
      $region27: #{tpu_custom_call.1} parent=5 // pred_region
        // Predicated region
        $region29: #{tpu_custom_call.1} parent=27 // pred_check
          %p194 = pneg %p45
        $region30: #{tpu_custom_call.1} parent=27 // pred_check_branch
          %196 = sbr.rel (%p194) target = $region32
        $region31: #{tpu_custom_call.1} parent=27 // pred_region
          %s197 = smul.u32 16, %s19
          %p198 = scmp.lt.s32.totalorder %s18, 1
          %s199 = scalar_select %p198, %s18, 1
          %p200 = scmp.lt.s32.totalorder %s197, 31
          %s201 = scalar_select %p200, %s197, 31
          %s202 = smul.addr %s199, 32
          %s203 = sadd.s32 %s201, %s202
          %s204 = smul.addr %s203, 4
          %s205 = scalar_lea.vmem %s0, %s204
          %s206 = smul.u32 16, %s19
        $region32: #{tpu_custom_call.1} parent=27 // pred_fallthru
          _
        // Predicated region
        $region33: #{tpu_custom_call.1} parent=27 // pred_check
          %p207 = pneg %p71
        $region34: #{tpu_custom_call.1} parent=27 // pred_check_branch
          %209 = sbr.rel (%p207) target = $region36
        $region35: #{tpu_custom_call.1} parent=27 // pred_region
          %s210 = sand.u32 %s61, 1
          %s211 = sand.u32 %s61, 1
          %s212 = smul.addr %s211, 64
          %s213 = scalar_lea.vmem [#allocation3], %s212
          %s214 = smul.addr %s19, 4
          %s215 = scalar_lea.vmem %s1, %s214
          // Predicated region
          $region37: #{tpu_custom_call.1} parent=35 // pred_check
            _
          $region38: #{tpu_custom_call.1} parent=35 // pred_check_branch
            %217 = sbr.rel (0) target = $region40
          $region39: #{tpu_custom_call.1} parent=35 // pred_region
            // Predicated region
            $region41: #{tpu_custom_call.1} parent=39 // pred_check
              _
            $region42: #{tpu_custom_call.1} parent=39 // pred_check_branch
              %219 = sbr.rel target = $region44
            $region43: #{tpu_custom_call.1} parent=39 // pred_region
              // Predicated region
              $region56: #{tpu_custom_call.1} parent=43 // pred_check
                _
              $region57: #{tpu_custom_call.1} parent=43 // pred_check_branch
                %265 = sbr.rel (0) target = $region59
              $region58: #{tpu_custom_call.1} parent=43 // pred_region
                loop: start=0, step=1, limit=1
                $region60: #{tpu_custom_call.1} parent=58 // loop_pre_header
                  _
                $region61: #{tpu_custom_call.1} parent=58 // loop_header
                  %s267 = sphi 0, %s271
                  %p268 = scmp.ge.s32.totalorder %s267, 1
                  %s272 = sphi %s215, %s215
                  %s273 = sphi %s213, %s213
                $region62: #{tpu_custom_call.1} parent=58 // loop_header_branch
                  %270 = sbr.rel (%p268) target = $region66
                $region63: #{tpu_custom_call.1} parent=58 // loop_body
                  _
                $region64: #{tpu_custom_call.1} parent=58 // loop_footer
                  %s271 = sadd.s32 1, %s267
                $region65: #{tpu_custom_call.1} parent=58 // loop_footer_branch
                  %266 = sbr.rel target = $region61
                $region66: #{tpu_custom_call.1} parent=58 // loop_exit
                  _
                %s275 = ssub.s32 16, 1
                loop: start=0, step=1, limit=1
                $region67: #{tpu_custom_call.1} parent=58 // loop_pre_header
                  _
                $region68: #{tpu_custom_call.1} parent=58 // loop_header
                  %s277 = sphi 0, %s281
                  %p278 = scmp.ge.s32.totalorder %s277, 1
                  %s282 = sphi %s215, %s215
                  %s283 = sphi %s213, %s213
                $region69: #{tpu_custom_call.1} parent=58 // loop_header_branch
                  %280 = sbr.rel (%p278) target = $region73
                $region70: #{tpu_custom_call.1} parent=58 // loop_body
                  %v284 = vld [vmem:[%s282] sm:%s275]
                  %285 = vst [vmem:[%s283] sm:%s275] %v284
                  %v286 = vld [vmem:[%s282 + $0x8] sm:%s275]
                  %287 = vst [vmem:[%s283 + $0x4] sm:%s275] %v286
                  %v288 = vld [vmem:[%s282 + $0x10] sm:%s275]
                  %289 = vst [vmem:[%s283 + $0x8] sm:%s275] %v288
                  %v290 = vld [vmem:[%s282 + $0x18] sm:%s275]
                  %291 = vst [vmem:[%s283 + $0xc] sm:%s275] %v290
                  %v292 = vld [vmem:[%s282 + $0x20] sm:%s275]
                  %293 = vst [vmem:[%s283 + $0x10] sm:%s275] %v292
                  %v294 = vld [vmem:[%s282 + $0x28] sm:%s275]
                  %295 = vst [vmem:[%s283 + $0x14] sm:%s275] %v294
                  %v296 = vld [vmem:[%s282 + $0x30] sm:%s275]
                  %297 = vst [vmem:[%s283 + $0x18] sm:%s275] %v296
                  %v298 = vld [vmem:[%s282 + $0x38] sm:%s275]
                  %299 = vst [vmem:[%s283 + $0x1c] sm:%s275] %v298
                  %v300 = vld [vmem:[%s282 + $0x40] sm:%s275]
                  %301 = vst [vmem:[%s283 + $0x20] sm:%s275] %v300
                  %v302 = vld [vmem:[%s282 + $0x48] sm:%s275]
                  %303 = vst [vmem:[%s283 + $0x24] sm:%s275] %v302
                  %v304 = vld [vmem:[%s282 + $0x50] sm:%s275]
                  %305 = vst [vmem:[%s283 + $0x28] sm:%s275] %v304
                  %v306 = vld [vmem:[%s282 + $0x58] sm:%s275]
                  %307 = vst [vmem:[%s283 + $0x2c] sm:%s275] %v306
                  %v308 = vld [vmem:[%s282 + $0x60] sm:%s275]
                  %309 = vst [vmem:[%s283 + $0x30] sm:%s275] %v308
                  %v310 = vld [vmem:[%s282 + $0x68] sm:%s275]
                  %311 = vst [vmem:[%s283 + $0x34] sm:%s275] %v310
                  %v312 = vld [vmem:[%s282 + $0x70] sm:%s275]
                  %313 = vst [vmem:[%s283 + $0x38] sm:%s275] %v312
                  %v314 = vld [vmem:[%s282 + $0x78] sm:%s275]
                  %315 = vst [vmem:[%s283 + $0x3c] sm:%s275] %v314
                $region71: #{tpu_custom_call.1} parent=58 // loop_footer
                  %s281 = sadd.s32 1, %s277
                $region72: #{tpu_custom_call.1} parent=58 // loop_footer_branch
                  %276 = sbr.rel target = $region68
                $region73: #{tpu_custom_call.1} parent=58 // loop_exit
                  _
              $region59: #{tpu_custom_call.1} parent=43 // pred_fallthru
                _
            $region44: #{tpu_custom_call.1} parent=39 // pred_fallthru
              _
            // Predicated region
            $region45: #{tpu_custom_call.1} parent=39 // pred_check
              _
            $region46: #{tpu_custom_call.1} parent=39 // pred_check_branch
              %221 = sbr.rel (0) target = $region48
            $region47: #{tpu_custom_call.1} parent=39 // pred_region
              %s223 = ssub.s32 16, 1
              loop: start=0, step=1, limit=1
              $region49: #{tpu_custom_call.1} parent=47 // loop_pre_header
                _
              $region50: #{tpu_custom_call.1} parent=47 // loop_header
                %s225 = sphi 0, %s229
                %p226 = scmp.ge.s32.totalorder %s225, 1
                %s230 = sphi %s215, %s215
                %s231 = sphi %s213, %s213
              $region51: #{tpu_custom_call.1} parent=47 // loop_header_branch
                %228 = sbr.rel (%p226) target = $region55
              $region52: #{tpu_custom_call.1} parent=47 // loop_body
                %v232 = vld [vmem:[%s230] sm:%s223]
                %233 = vst [vmem:[%s231] sm:%s223] %v232
                %v234 = vld [vmem:[%s230 + $0x8] sm:%s223]
                %235 = vst [vmem:[%s231 + $0x4] sm:%s223] %v234
                %v236 = vld [vmem:[%s230 + $0x10] sm:%s223]
                %237 = vst [vmem:[%s231 + $0x8] sm:%s223] %v236
                %v238 = vld [vmem:[%s230 + $0x18] sm:%s223]
                %239 = vst [vmem:[%s231 + $0xc] sm:%s223] %v238
                %v240 = vld [vmem:[%s230 + $0x20] sm:%s223]
                %241 = vst [vmem:[%s231 + $0x10] sm:%s223] %v240
                %v242 = vld [vmem:[%s230 + $0x28] sm:%s223]
                %243 = vst [vmem:[%s231 + $0x14] sm:%s223] %v242
                %v244 = vld [vmem:[%s230 + $0x30] sm:%s223]
                %245 = vst [vmem:[%s231 + $0x18] sm:%s223] %v244
                %v246 = vld [vmem:[%s230 + $0x38] sm:%s223]
                %247 = vst [vmem:[%s231 + $0x1c] sm:%s223] %v246
                %v248 = vld [vmem:[%s230 + $0x40] sm:%s223]
                %249 = vst [vmem:[%s231 + $0x20] sm:%s223] %v248
                %v250 = vld [vmem:[%s230 + $0x48] sm:%s223]
                %251 = vst [vmem:[%s231 + $0x24] sm:%s223] %v250
                %v252 = vld [vmem:[%s230 + $0x50] sm:%s223]
                %253 = vst [vmem:[%s231 + $0x28] sm:%s223] %v252
                %v254 = vld [vmem:[%s230 + $0x58] sm:%s223]
                %255 = vst [vmem:[%s231 + $0x2c] sm:%s223] %v254
                %v256 = vld [vmem:[%s230 + $0x60] sm:%s223]
                %257 = vst [vmem:[%s231 + $0x30] sm:%s223] %v256
                %v258 = vld [vmem:[%s230 + $0x68] sm:%s223]
                %259 = vst [vmem:[%s231 + $0x34] sm:%s223] %v258
                %v260 = vld [vmem:[%s230 + $0x70] sm:%s223]
                %261 = vst [vmem:[%s231 + $0x38] sm:%s223] %v260
                %v262 = vld [vmem:[%s230 + $0x78] sm:%s223]
                %263 = vst [vmem:[%s231 + $0x3c] sm:%s223] %v262
              $region53: #{tpu_custom_call.1} parent=47 // loop_footer
                %s229 = sadd.s32 1, %s225
              $region54: #{tpu_custom_call.1} parent=47 // loop_footer_branch
                %224 = sbr.rel target = $region50
              $region55: #{tpu_custom_call.1} parent=47 // loop_exit
                _
            $region48: #{tpu_custom_call.1} parent=39 // pred_fallthru
              _
          $region40: #{tpu_custom_call.1} parent=35 // pred_fallthru
            _
          %316 = vnop
        $region36: #{tpu_custom_call.1} parent=27 // pred_fallthru
          _
      $region28: #{tpu_custom_call.1} parent=5 // pred_fallthru
        _
      %p317 = scmp.le.s32.totalorder 1, %s11
      %p318 = scmp.lt.s32.totalorder %s11, 5
      %p319 = pnand %p317, %p318
      %p320 = pneg %p319
      // Predicated region
      $region74: #{tpu_custom_call.1} parent=5 // pred_check
        _
      $region75: #{tpu_custom_call.1} parent=5 // pred_check_branch
        %322 = sbr.rel (%p319) target = $region77
      $region76: #{tpu_custom_call.1} parent=5 // pred_region
        %s323 = ssub.s32 %s11, 1
        %s324 = sand.u32 %s64, 1
        %s325 = sand.u32 %s64, 1
        %s326 = smul.addr %s325, 64
        %s327 = scalar_lea.vmem [#allocation3], %s326
        // Predicated region
        $region78: #{tpu_custom_call.1} parent=76 // pred_check
          %p328 = pneg %p77
        $region79: #{tpu_custom_call.1} parent=76 // pred_check_branch
          %330 = sbr.rel (%p328) target = $region81
        $region80: #{tpu_custom_call.1} parent=76 // pred_region
          _
        $region81: #{tpu_custom_call.1} parent=76 // pred_fallthru
          _
        %s331 = smul.u32 16, %s21
        %p332 = scmp.lt.s32.totalorder %s20, 1
        %s333 = scalar_select %p332, %s20, 1
        %p334 = scmp.lt.s32.totalorder %s331, 31
        %s335 = scalar_select %p334, %s331, 31
        %s336 = smul.addr %s333, 32
        %s337 = sadd.s32 %s335, %s336
        %s338 = smul.addr %s337, 4
        %s339 = scalar_lea.vmem %s0, %s338
        %p340 = pneg %p51
        %p341 = pneg %p48
        %s342 = sand.u32 %s64, 1
        %s343 = sand.u32 %s64, 1
        %s344 = smul.addr %s343, 64
        %s345 = scalar_lea.vmem [#allocation3], %s344
        %p346 = pneg %p77
        %p347 = pneg %p74
        %p348 = pneg %p98
        %p349 = pneg %p95
        %p350 = pneg %p119
        %p351 = pneg %p116
        %p352 = pneg %p140
        %p353 = pneg %p137
        %p354 = pneg %p166
        %p355 = pneg %p163
        %p356 = scmp.lt.s32.totalorder %s20, 1
        %s357 = scalar_select %p356, %s20, 1
        %s358 = smul.addr %s357, 16
        %s359 = smul.addr %s358, 4
        %s360 = scalar_lea.vmem %s5, %s359
        %s361 = smul.u32 16, %s21
        %p362 = scmp.lt.s32.totalorder %s20, 1
        %s363 = scalar_select %p362, %s20, 1
        %p364 = scmp.lt.s32.totalorder %s361, 31
        %s365 = scalar_select %p364, %s361, 31
        %s366 = smul.addr %s363, 32
        %s367 = sadd.s32 %s365, %s366
        %s368 = smul.addr %s367, 4
        %s369 = scalar_lea.vmem %s0, %s368
        %s370 = smul.u32 16, %s21
        %p371 = scmp.lt.s32.totalorder %s20, 1
        %s372 = scalar_select %p371, %s20, 1
        %s373 = smul.addr %s372, 16
        %s374 = smul.addr %s373, 4
        %s375 = scalar_lea.vmem %s5, %s374
        %p377 = scmp.eq.s32.totalorder %s21, 0
        // Predicated region
        $region82: #{tpu_custom_call.1} parent=76 // pred_check
          %p378 = pneg %p377
        $region83: #{tpu_custom_call.1} parent=76 // pred_check_branch
          %380 = sbr.rel (%p378) target = $region85
        $region84: #{tpu_custom_call.1} parent=76 // pred_region
          %vm381 = vcmask 64512
          %382 = vst.msk [vmem:[#allocation2] sm:$0xff] %vm381, 0.0
          %383 = vst.msk [vmem:[#allocation2 + $0x8] sm:$0xff] %vm381, 0.0
          %384 = vst.msk [vmem:[#allocation2 + $0x10] sm:$0xff] %vm381, 0.0
          %385 = vst.msk [vmem:[#allocation2 + $0x18] sm:$0xff] %vm381, 0.0
          %386 = vst.msk [vmem:[#allocation2 + $0x20] sm:$0xff] %vm381, 0.0
          %387 = vst.msk [vmem:[#allocation2 + $0x28] sm:$0xff] %vm381, 0.0
          %388 = vst.msk [vmem:[#allocation2 + $0x30] sm:$0xff] %vm381, 0.0
          %389 = vst.msk [vmem:[#allocation2 + $0x38] sm:$0xff] %vm381, 0.0
          %390 = vst.msk [vmem:[#allocation2 + $0x40] sm:$0xff] %vm381, 0.0
          %391 = vst.msk [vmem:[#allocation2 + $0x48] sm:$0xff] %vm381, 0.0
          %392 = vst.msk [vmem:[#allocation2 + $0x50] sm:$0xff] %vm381, 0.0
          %393 = vst.msk [vmem:[#allocation2 + $0x58] sm:$0xff] %vm381, 0.0
          %394 = vst.msk [vmem:[#allocation2 + $0x60] sm:$0xff] %vm381, 0.0
          %395 = vst.msk [vmem:[#allocation2 + $0x68] sm:$0xff] %vm381, 0.0
          %396 = vst.msk [vmem:[#allocation2 + $0x70] sm:$0xff] %vm381, 0.0
          %397 = vst.msk [vmem:[#allocation2 + $0x78] sm:$0xff] %vm381, 0.0
        $region85: #{tpu_custom_call.1} parent=76 // pred_fallthru
          _
        %v398 = vld [vmem:[#allocation2] sm:$0xff]
        %v399 = vld [vmem:[#allocation2 + $0x8] sm:$0xff]
        %v400 = vld [vmem:[#allocation2 + $0x10] sm:$0xff]
        %v401 = vld [vmem:[#allocation2 + $0x18] sm:$0xff]
        %v402 = vld [vmem:[#allocation2 + $0x20] sm:$0xff]
        %v403 = vld [vmem:[#allocation2 + $0x28] sm:$0xff]
        %v404 = vld [vmem:[#allocation2 + $0x30] sm:$0xff]
        %v405 = vld [vmem:[#allocation2 + $0x38] sm:$0xff]
        %v406 = vld [vmem:[#allocation2 + $0x40] sm:$0xff]
        %v407 = vld [vmem:[#allocation2 + $0x48] sm:$0xff]
        %v408 = vld [vmem:[#allocation2 + $0x50] sm:$0xff]
        %v409 = vld [vmem:[#allocation2 + $0x58] sm:$0xff]
        %v410 = vld [vmem:[#allocation2 + $0x60] sm:$0xff]
        %v411 = vld [vmem:[#allocation2 + $0x68] sm:$0xff]
        %v412 = vld [vmem:[#allocation2 + $0x70] sm:$0xff]
        %v413 = vld [vmem:[#allocation2 + $0x78] sm:$0xff]
        %v414 = vld [vmem:[%s327] sm:$0xf]
        %v415 = vld [vmem:[%s327 + $0x4] sm:$0xf]
        %v416 = vld [vmem:[%s327 + $0x8] sm:$0xf]
        %v417 = vld [vmem:[%s327 + $0xc] sm:$0xf]
        %v418 = vld [vmem:[%s327 + $0x10] sm:$0xf]
        %v419 = vld [vmem:[%s327 + $0x14] sm:$0xf]
        %v420 = vld [vmem:[%s327 + $0x18] sm:$0xf]
        %v421 = vld [vmem:[%s327 + $0x1c] sm:$0xf]
        %v422 = vld [vmem:[%s327 + $0x20] sm:$0xf]
        %v423 = vld [vmem:[%s327 + $0x24] sm:$0xf]
        %v424 = vld [vmem:[%s327 + $0x28] sm:$0xf]
        %v425 = vld [vmem:[%s327 + $0x2c] sm:$0xf]
        %v426 = vld [vmem:[%s327 + $0x30] sm:$0xf]
        %v427 = vld [vmem:[%s327 + $0x34] sm:$0xf]
        %v428 = vld [vmem:[%s327 + $0x38] sm:$0xf]
        %v429 = vld [vmem:[%s327 + $0x3c] sm:$0xf]
        %v430 = vld [vmem:[%s369] sm:$0xf]
        %v431 = vld [vmem:[%s369 + $0x4] sm:$0xf]
        %v432 = vld [vmem:[%s369 + $0x8] sm:$0xf]
        %v433 = vld [vmem:[%s369 + $0xc] sm:$0xf]
        %v434 = vld [vmem:[%s369 + $0x10] sm:$0xf]
        %v435 = vld [vmem:[%s369 + $0x14] sm:$0xf]
        %v436 = vld [vmem:[%s369 + $0x18] sm:$0xf]
        %v437 = vld [vmem:[%s369 + $0x1c] sm:$0xf]
        %v438 = vld [vmem:[%s369 + $0x20] sm:$0xf]
        %v439 = vld [vmem:[%s369 + $0x24] sm:$0xf]
        %v440 = vld [vmem:[%s369 + $0x28] sm:$0xf]
        %v441 = vld [vmem:[%s369 + $0x2c] sm:$0xf]
        %v442 = vld [vmem:[%s369 + $0x30] sm:$0xf]
        %v443 = vld [vmem:[%s369 + $0x34] sm:$0xf]
        %v444 = vld [vmem:[%s369 + $0x38] sm:$0xf]
        %v445 = vld [vmem:[%s369 + $0x3c] sm:$0xf]
        %v462 = vunpack.c.l.b16 %v414
        %v463 = vunpack.c.l.b16 %v415
        %v464 = vunpack.c.l.b16 %v416
        %v465 = vunpack.c.l.b16 %v417
        %v466 = vunpack.c.l.b16 %v418
        %v467 = vunpack.c.l.b16 %v419
        %v468 = vunpack.c.l.b16 %v420
        %v469 = vunpack.c.l.b16 %v421
        %v470 = vunpack.c.l.b16 %v422
        %v471 = vunpack.c.l.b16 %v423
        %v472 = vunpack.c.l.b16 %v424
        %v473 = vunpack.c.l.b16 %v425
        %v474 = vunpack.c.l.b16 %v426
        %v475 = vunpack.c.l.b16 %v427
        %v476 = vunpack.c.l.b16 %v428
        %v477 = vunpack.c.l.b16 %v429
        %v478 = vpack.c.b16 %v463, %v462
        %v479 = vpack.c.b16 %v465, %v464
        %v480 = vpack.c.b16 %v467, %v466
        %v481 = vpack.c.b16 %v469, %v468
        %v482 = vpack.c.b16 %v471, %v470
        %v483 = vpack.c.b16 %v473, %v472
        %v484 = vpack.c.b16 %v475, %v474
        %v485 = vpack.c.b16 %v477, %v476
        %v510 = vunpack.c.l.b16 %v430
        %v511 = vunpack.c.l.b16 %v431
        %v512 = vunpack.c.l.b16 %v432
        %v513 = vunpack.c.l.b16 %v433
        %v514 = vunpack.c.l.b16 %v434
        %v515 = vunpack.c.l.b16 %v435
        %v516 = vunpack.c.l.b16 %v436
        %v517 = vunpack.c.l.b16 %v437
        %v518 = vunpack.c.l.b16 %v438
        %v519 = vunpack.c.l.b16 %v439
        %v520 = vunpack.c.l.b16 %v440
        %v521 = vunpack.c.l.b16 %v441
        %v522 = vunpack.c.l.b16 %v442
        %v523 = vunpack.c.l.b16 %v443
        %v524 = vunpack.c.l.b16 %v444
        %v525 = vunpack.c.l.b16 %v445
        %v526 = vpack.c.b16 %v511, %v510
        %v527 = vpack.c.b16 %v513, %v512
        %v528 = vpack.c.b16 %v515, %v514
        %v529 = vpack.c.b16 %v517, %v516
        %v530 = vpack.c.b16 %v519, %v518
        %v531 = vpack.c.b16 %v521, %v520
        %v532 = vpack.c.b16 %v523, %v522
        %v533 = vpack.c.b16 %v525, %v524
        %542 = vmatpush.bf16.msra.mxu0 %v533
        %543 = vmatpush.bf16.msra.mxu0 %v532
        %544 = vmatpush.bf16.msra.mxu0 %v531
        %545 = vmatpush.bf16.msra.mxu0 %v530
        %546 = vmatpush.bf16.msra.mxu0 %v529
        %547 = vmatpush.bf16.msra.mxu0 %v528
        %548 = vmatpush.bf16.msra.mxu0 %v527
        %549 = vmatpush.bf16.msra.mxu0 %v526
        %550 = vmatmul.bf16.gmra.mxu0 %v478
        %v551 = vpop.f32.mrf.mxu0
        %v552 = vadd.f32 0.0, %v551
        %v553 = vpop.f32.mrf.mxu0
        %v554 = vadd.f32 0.0, %v553
        %555 = vmatmul.bf16.gmra.mxu0 %v479
        %v556 = vpop.f32.mrf.mxu0
        %v557 = vadd.f32 0.0, %v556
        %v558 = vpop.f32.mrf.mxu0
        %v559 = vadd.f32 0.0, %v558
        %560 = vmatmul.bf16.gmra.mxu0 %v480
        %v561 = vpop.f32.mrf.mxu0
        %v562 = vadd.f32 0.0, %v561
        %v563 = vpop.f32.mrf.mxu0
        %v564 = vadd.f32 0.0, %v563
        %565 = vmatmul.bf16.gmra.mxu0 %v481
        %v566 = vpop.f32.mrf.mxu0
        %v567 = vadd.f32 0.0, %v566
        %v568 = vpop.f32.mrf.mxu0
        %v569 = vadd.f32 0.0, %v568
        %570 = vmatmul.bf16.gmra.mxu0 %v482
        %v571 = vpop.f32.mrf.mxu0
        %v572 = vadd.f32 0.0, %v571
        %v573 = vpop.f32.mrf.mxu0
        %v574 = vadd.f32 0.0, %v573
        %575 = vmatmul.bf16.gmra.mxu0 %v483
        %v576 = vpop.f32.mrf.mxu0
        %v577 = vadd.f32 0.0, %v576
        %v578 = vpop.f32.mrf.mxu0
        %v579 = vadd.f32 0.0, %v578
        %580 = vmatmul.bf16.gmra.mxu0 %v484
        %v581 = vpop.f32.mrf.mxu0
        %v582 = vadd.f32 0.0, %v581
        %v583 = vpop.f32.mrf.mxu0
        %v584 = vadd.f32 0.0, %v583
        %585 = vmatmul.bf16.gmra.mxu0 %v485
        %v586 = vpop.f32.mrf.mxu0
        %v587 = vadd.f32 0.0, %v586
        %v588 = vpop.f32.mrf.mxu0
        %v589 = vadd.f32 0.0, %v588
        %590 = vdwg.mxu0
        %v591 = vadd.f32 %v398, %v552
        %v592 = vadd.f32 %v399, %v554
        %v593 = vadd.f32 %v400, %v557
        %v594 = vadd.f32 %v401, %v559
        %v595 = vadd.f32 %v402, %v562
        %v596 = vadd.f32 %v403, %v564
        %v597 = vadd.f32 %v404, %v567
        %v598 = vadd.f32 %v405, %v569
        %v599 = vadd.f32 %v406, %v572
        %v600 = vadd.f32 %v407, %v574
        %v601 = vadd.f32 %v408, %v577
        %v602 = vadd.f32 %v409, %v579
        %v603 = vadd.f32 %v410, %v582
        %v604 = vadd.f32 %v411, %v584
        %v605 = vadd.f32 %v412, %v587
        %v606 = vadd.f32 %v413, %v589
        %vm607 = vcmask 64512
        %608 = vst.msk [vmem:[#allocation2] sm:$0xff] %vm607, %v591
        %609 = vst.msk [vmem:[#allocation2 + $0x8] sm:$0xff] %vm607, %v592
        %610 = vst.msk [vmem:[#allocation2 + $0x10] sm:$0xff] %vm607, %v593
        %611 = vst.msk [vmem:[#allocation2 + $0x18] sm:$0xff] %vm607, %v594
        %612 = vst.msk [vmem:[#allocation2 + $0x20] sm:$0xff] %vm607, %v595
        %613 = vst.msk [vmem:[#allocation2 + $0x28] sm:$0xff] %vm607, %v596
        %614 = vst.msk [vmem:[#allocation2 + $0x30] sm:$0xff] %vm607, %v597
        %615 = vst.msk [vmem:[#allocation2 + $0x38] sm:$0xff] %vm607, %v598
        %616 = vst.msk [vmem:[#allocation2 + $0x40] sm:$0xff] %vm607, %v599
        %617 = vst.msk [vmem:[#allocation2 + $0x48] sm:$0xff] %vm607, %v600
        %618 = vst.msk [vmem:[#allocation2 + $0x50] sm:$0xff] %vm607, %v601
        %619 = vst.msk [vmem:[#allocation2 + $0x58] sm:$0xff] %vm607, %v602
        %620 = vst.msk [vmem:[#allocation2 + $0x60] sm:$0xff] %vm607, %v603
        %621 = vst.msk [vmem:[#allocation2 + $0x68] sm:$0xff] %vm607, %v604
        %622 = vst.msk [vmem:[#allocation2 + $0x70] sm:$0xff] %vm607, %v605
        %623 = vst.msk [vmem:[#allocation2 + $0x78] sm:$0xff] %vm607, %v606
        %p624 = scmp.eq.s32.totalorder %s21, 1
        // Predicated region
        $region86: #{tpu_custom_call.1} parent=76 // pred_check
          %p625 = pneg %p624
        $region87: #{tpu_custom_call.1} parent=76 // pred_check_branch
          %627 = sbr.rel (%p625) target = $region89
        $region88: #{tpu_custom_call.1} parent=76 // pred_region
          %v628 = vld [vmem:[#allocation2] sm:$0xff]
          %v629 = vld [vmem:[#allocation2 + $0x8] sm:$0xff]
          %v630 = vld [vmem:[#allocation2 + $0x10] sm:$0xff]
          %v631 = vld [vmem:[#allocation2 + $0x18] sm:$0xff]
          %v632 = vld [vmem:[#allocation2 + $0x20] sm:$0xff]
          %v633 = vld [vmem:[#allocation2 + $0x28] sm:$0xff]
          %v634 = vld [vmem:[#allocation2 + $0x30] sm:$0xff]
          %v635 = vld [vmem:[#allocation2 + $0x38] sm:$0xff]
          %v636 = vld [vmem:[#allocation2 + $0x40] sm:$0xff]
          %v637 = vld [vmem:[#allocation2 + $0x48] sm:$0xff]
          %v638 = vld [vmem:[#allocation2 + $0x50] sm:$0xff]
          %v639 = vld [vmem:[#allocation2 + $0x58] sm:$0xff]
          %v640 = vld [vmem:[#allocation2 + $0x60] sm:$0xff]
          %v641 = vld [vmem:[#allocation2 + $0x68] sm:$0xff]
          %v642 = vld [vmem:[#allocation2 + $0x70] sm:$0xff]
          %v643 = vld [vmem:[#allocation2 + $0x78] sm:$0xff]
          %v644 = vpack.c.bf16 %v629, %v628
          %v645 = vpack.c.bf16 %v631, %v630
          %v646 = vpack.c.bf16 %v633, %v632
          %v647 = vpack.c.bf16 %v635, %v634
          %v648 = vpack.c.bf16 %v637, %v636
          %v649 = vpack.c.bf16 %v639, %v638
          %v650 = vpack.c.bf16 %v641, %v640
          %v651 = vpack.c.bf16 %v643, %v642
          %v652 = vld [vmem:[%s2] sm:$0xf]
          %v653 = vld [vmem:[%s3] sm:$0x1]
          %v655 = vperm.slane %v653, 0
          %v658 = vsel %vm607, %v644, 0
          %v661 = vsel %vm607, %v645, 0
          %v664 = vsel %vm607, %v646, 0
          %v667 = vsel %vm607, %v647, 0
          %v670 = vsel %vm607, %v648, 0
          %v673 = vsel %vm607, %v649, 0
          %v676 = vsel %vm607, %v650, 0
          %v679 = vsel %vm607, %v651, 0
          %vm681 = vcmask 1043456
          %v683 = vsel %vm681, %v652, 0
          %685 = vmatpush.bf16.msra.mxu0 0
          %686 = vmatpush.bf16.msra.mxu0 0
          %687 = vmatpush.bf16.msra.mxu0 0
          %688 = vmatpush.bf16.msra.mxu0 0
          %689 = vmatpush.bf16.msra.mxu0 0
          %690 = vmatpush.bf16.msra.mxu0 0
          %691 = vmatpush.bf16.msra.mxu0 0
          %692 = vmatpush.bf16.msra.mxu0 %v683
          %693 = vmatmul.bf16.gmra.mxu0 %v658
          %v694 = vpop.f32.mrf.mxu0
          %v695 = vadd.f32 %v655, %v694
          %v696 = vpop.f32.mrf.mxu0
          %v697 = vadd.f32 %v655, %v696
          %698 = vmatmul.bf16.gmra.mxu0 %v661
          %v699 = vpop.f32.mrf.mxu0
          %v700 = vadd.f32 %v655, %v699
          %v701 = vpop.f32.mrf.mxu0
          %v702 = vadd.f32 %v655, %v701
          %703 = vmatmul.bf16.gmra.mxu0 %v664
          %v704 = vpop.f32.mrf.mxu0
          %v705 = vadd.f32 %v655, %v704
          %v706 = vpop.f32.mrf.mxu0
          %v707 = vadd.f32 %v655, %v706
          %708 = vmatmul.bf16.gmra.mxu0 %v667
          %v709 = vpop.f32.mrf.mxu0
          %v710 = vadd.f32 %v655, %v709
          %v711 = vpop.f32.mrf.mxu0
          %v712 = vadd.f32 %v655, %v711
          %713 = vmatmul.bf16.gmra.mxu0 %v670
          %v714 = vpop.f32.mrf.mxu0
          %v715 = vadd.f32 %v655, %v714
          %v716 = vpop.f32.mrf.mxu0
          %v717 = vadd.f32 %v655, %v716
          %718 = vmatmul.bf16.gmra.mxu0 %v673
          %v719 = vpop.f32.mrf.mxu0
          %v720 = vadd.f32 %v655, %v719
          %v721 = vpop.f32.mrf.mxu0
          %v722 = vadd.f32 %v655, %v721
          %723 = vmatmul.bf16.gmra.mxu0 %v676
          %v724 = vpop.f32.mrf.mxu0
          %v725 = vadd.f32 %v655, %v724
          %v726 = vpop.f32.mrf.mxu0
          %v727 = vadd.f32 %v655, %v726
          %728 = vmatmul.bf16.gmra.mxu0 %v679
          %v729 = vpop.f32.mrf.mxu0
          %v730 = vadd.f32 %v655, %v729
          %v731 = vpop.f32.mrf.mxu0
          %v732 = vadd.f32 %v655, %v731
          %733 = vdwg.mxu0
          %v734 = vmax.f32 %v695, 0.0
          %v735 = vmax.f32 %v697, 0.0
          %v736 = vmax.f32 %v700, 0.0
          %v737 = vmax.f32 %v702, 0.0
          %v738 = vmax.f32 %v705, 0.0
          %v739 = vmax.f32 %v707, 0.0
          %v740 = vmax.f32 %v710, 0.0
          %v741 = vmax.f32 %v712, 0.0
          %v742 = vmax.f32 %v715, 0.0
          %v743 = vmax.f32 %v717, 0.0
          %v744 = vmax.f32 %v720, 0.0
          %v745 = vmax.f32 %v722, 0.0
          %v746 = vmax.f32 %v725, 0.0
          %v747 = vmax.f32 %v727, 0.0
          %v748 = vmax.f32 %v730, 0.0
          %v749 = vmax.f32 %v732, 0.0
          %v750 = vld [vmem:[%s4] sm:$0xff]
          %v751 = vld [vmem:[%s4 + $0x8] sm:$0xff]
          %v752 = vld [vmem:[%s4 + $0x10] sm:$0xff]
          %v753 = vld [vmem:[%s4 + $0x18] sm:$0xff]
          %v754 = vld [vmem:[%s4 + $0x20] sm:$0xff]
          %v755 = vld [vmem:[%s4 + $0x28] sm:$0xff]
          %v756 = vld [vmem:[%s4 + $0x30] sm:$0xff]
          %v757 = vld [vmem:[%s4 + $0x38] sm:$0xff]
          %v758 = vld [vmem:[%s4 + $0x40] sm:$0xff]
          %v759 = vld [vmem:[%s4 + $0x48] sm:$0xff]
          %v760 = vld [vmem:[%s4 + $0x50] sm:$0xff]
          %v761 = vld [vmem:[%s4 + $0x58] sm:$0xff]
          %v762 = vld [vmem:[%s4 + $0x60] sm:$0xff]
          %v763 = vld [vmem:[%s4 + $0x68] sm:$0xff]
          %v764 = vld [vmem:[%s4 + $0x70] sm:$0xff]
          %v765 = vld [vmem:[%s4 + $0x78] sm:$0xff]
          %v766 = vmul.f32 %v734, %v750
          %v767 = vmul.f32 %v735, %v751
          %v768 = vmul.f32 %v736, %v752
          %v769 = vmul.f32 %v737, %v753
          %v770 = vmul.f32 %v738, %v754
          %v771 = vmul.f32 %v739, %v755
          %v772 = vmul.f32 %v740, %v756
          %v773 = vmul.f32 %v741, %v757
          %v774 = vmul.f32 %v742, %v758
          %v775 = vmul.f32 %v743, %v759
          %v776 = vmul.f32 %v744, %v760
          %v777 = vmul.f32 %v745, %v761
          %v778 = vmul.f32 %v746, %v762
          %v779 = vmul.f32 %v747, %v763
          %v780 = vmul.f32 %v748, %v764
          %v781 = vmul.f32 %v749, %v765
          %v782 = vpack.c.bf16 %v766, %v766
          %v783 = vpack.c.bf16 %v767, %v767
          %v784 = vpack.c.bf16 %v768, %v768
          %v785 = vpack.c.bf16 %v769, %v769
          %v786 = vpack.c.bf16 %v770, %v770
          %v787 = vpack.c.bf16 %v771, %v771
          %v788 = vpack.c.bf16 %v772, %v772
          %v789 = vpack.c.bf16 %v773, %v773
          %v790 = vpack.c.bf16 %v774, %v774
          %v791 = vpack.c.bf16 %v775, %v775
          %v792 = vpack.c.bf16 %v776, %v776
          %v793 = vpack.c.bf16 %v777, %v777
          %v794 = vpack.c.bf16 %v778, %v778
          %v795 = vpack.c.bf16 %v779, %v779
          %v796 = vpack.c.bf16 %v780, %v780
          %v797 = vpack.c.bf16 %v781, %v781
          %vm798 = vcmask 60416
          %799 = vst.msk [vmem:[%s375] sm:$0xf] %vm798, %v782
          %800 = vst.msk [vmem:[%s375 + $0x4] sm:$0xf] %vm798, %v783
          %801 = vst.msk [vmem:[%s375 + $0x8] sm:$0xf] %vm798, %v784
          %802 = vst.msk [vmem:[%s375 + $0xc] sm:$0xf] %vm798, %v785
          %803 = vst.msk [vmem:[%s375 + $0x10] sm:$0xf] %vm798, %v786
          %804 = vst.msk [vmem:[%s375 + $0x14] sm:$0xf] %vm798, %v787
          %805 = vst.msk [vmem:[%s375 + $0x18] sm:$0xf] %vm798, %v788
          %806 = vst.msk [vmem:[%s375 + $0x1c] sm:$0xf] %vm798, %v789
          %807 = vst.msk [vmem:[%s375 + $0x20] sm:$0xf] %vm798, %v790
          %808 = vst.msk [vmem:[%s375 + $0x24] sm:$0xf] %vm798, %v791
          %809 = vst.msk [vmem:[%s375 + $0x28] sm:$0xf] %vm798, %v792
          %810 = vst.msk [vmem:[%s375 + $0x2c] sm:$0xf] %vm798, %v793
          %811 = vst.msk [vmem:[%s375 + $0x30] sm:$0xf] %vm798, %v794
          %812 = vst.msk [vmem:[%s375 + $0x34] sm:$0xf] %vm798, %v795
          %813 = vst.msk [vmem:[%s375 + $0x38] sm:$0xf] %vm798, %v796
          %814 = vst.msk [vmem:[%s375 + $0x3c] sm:$0xf] %vm798, %v797
        $region89: #{tpu_custom_call.1} parent=76 // pred_fallthru
          _
        %p815 = scmp.lt.s32.totalorder %s20, 1
        %s816 = scalar_select %p815, %s20, 1
        %s817 = smul.addr %s816, 16
        %s818 = smul.addr %s817, 4
        %s819 = scalar_lea.vmem %s5, %s818
        // Predicated region
        $region90: #{tpu_custom_call.1} parent=76 // pred_check
          %p820 = pneg %p163
        $region91: #{tpu_custom_call.1} parent=76 // pred_check_branch
          %822 = sbr.rel (%p820) target = $region93
        $region92: #{tpu_custom_call.1} parent=76 // pred_region
          _
        $region93: #{tpu_custom_call.1} parent=76 // pred_fallthru
          _
      $region77: #{tpu_custom_call.1} parent=5 // pred_fallthru
        _
      %p823 = scmp.le.s32.totalorder 2, %s11
      // Predicated region
      $region94: #{tpu_custom_call.1} parent=5 // pred_check
        %p824 = pneg %p823
      $region95: #{tpu_custom_call.1} parent=5 // pred_check_branch
        %826 = sbr.rel (%p824) target = $region97
      $region96: #{tpu_custom_call.1} parent=5 // pred_region
        %s827 = ssub.s32 %s11, 2
        // Predicated region
        $region98: #{tpu_custom_call.1} parent=96 // pred_check
          %p828 = pneg %p169
        $region99: #{tpu_custom_call.1} parent=96 // pred_check_branch
          %830 = sbr.rel (%p828) target = $region101
        $region100: #{tpu_custom_call.1} parent=96 // pred_region
          %p831 = scmp.lt.s32.totalorder %s22, 1
          %s832 = scalar_select %p831, %s22, 1
          %s833 = smul.addr %s832, 16
          %s834 = smul.addr %s833, 4
          %s835 = scalar_lea.vmem %s5, %s834
        $region101: #{tpu_custom_call.1} parent=96 // pred_fallthru
          _
      $region97: #{tpu_custom_call.1} parent=5 // pred_fallthru
        _
    $region6: #{tpu_custom_call.1} parent=1 // loop_footer
      %s15 = sadd.s32 1, %s11
    $region7: #{tpu_custom_call.1} parent=1 // loop_footer_branch
      %10 = sbr.rel target = $region3
    $region8: #{tpu_custom_call.1} parent=1 // loop_exit
      _

</llo_original>
